<compile_context>
chip_gen: v5e
topology: v5e:2x2
jax: 0.10.0
libtpu: 0.0.40
codegen_flags: <defaults>
</compile_context>

<pallas_src>
import functools

import jax
import jax.numpy as jnp
from jax.experimental import pallas as pl
from jax.experimental.pallas import tpu as pltpu

NEG_BIG = -10000000000.0  # matches the PyTorch constant exactly
Q_TILE = 128              # queries per grid step (full-MXU / lane-dense tiles)


def _round_up(x, m):
    return ((x + m - 1) // m) * m


def _attn_span_kernel(use_proj, tb_ref, x_ref, se_ref, *refs):
    # arg order: scalar-prefetch (SMEM), inputs (VMEM), output, scratch
    if use_proj:
        wp_ref, bp_ref, wa_ref, ba_ref, out_ref, xp_scr, lgt_scr = refs
    else:
        wa_ref, ba_ref, out_ref, lgt_scr = refs
        xp_scr = None

    t = pl.program_id(0)
    prev_b = tb_ref[jnp.maximum(t - 1, 0)]
    is_new_row = jnp.logical_or(t == 0, tb_ref[t] != prev_b)

    # ---- per-batch-row work: only when the row changes (dedup) -------------
    @pl.when(is_new_row)
    def _():
        x = x_ref[0]                                   # [T, D] bf16
        if use_proj:
            xp_f32 = jnp.dot(x, wp_ref[...],
                             preferred_element_type=jnp.float32) + bp_ref[...]
            xp_b = xp_f32.astype(xp_scr.dtype)         # bf16 cache for the MXU
            xp_scr[...] = xp_b                         # [T, P]
        else:
            xp_b = x
        # lane-major per-token logits [1, T]: bf16 MXU operands, f32 accum.
        lgt_scr[...] = jax.lax.dot_general(
            wa_ref[...], xp_b, (((1,), (1,)), ((), ())),
            preferred_element_type=jnp.float32) + ba_ref[...]

    xp = xp_scr[...] if use_proj else x_ref[0]         # [T, P] bf16
    lgt = lgt_scr[...]                                 # [1, T] f32

    T = lgt.shape[1]
    se = se_ref[0]                                     # [QT, 2] int32
    QT = se.shape[0]
    s = se[:, 0:1]                                     # [QT, 1]
    e = se[:, 1:2]                                     # [QT, 1]

    # span mask + masked logits, queries on sublanes, tokens on lanes: [QT, T]
    t_idx = jax.lax.broadcasted_iota(jnp.int32, (QT, T), 1)
    in_span = jnp.logical_and(t_idx >= s, t_idx <= e)
    logits = lgt + jnp.where(in_span, 0.0, NEG_BIG)

    # f32 softmax over the token (lane) axis
    m = jnp.max(logits, axis=1, keepdims=True)
    p = jnp.exp(logits - m)
    denom = jnp.sum(p, axis=1, keepdims=True)
    attn = p * pl.reciprocal(denom, approx=False)      # [QT, T] f32

    # span-weighted sum: [QT, T] @ [T, P] on the MXU (bf16 in, f32 accumulate)
    out_ref[...] = jnp.dot(attn.astype(xp.dtype), xp,
                           preferred_element_type=jnp.float32
                           ).astype(out_ref.dtype)


def attn_span_repr(encoded_input, start_ids, end_ids, query_batch_idx, params,
                   use_proj=False, q_tile=Q_TILE):
    """Pallas equivalent of the 'attn' span representation forward."""
    B, T, D = encoded_input.shape
    Q = start_ids.shape[0]
    QT = q_tile
    assert QT % 8 == 0

    start_ids = start_ids.astype(jnp.int32)
    end_ids = end_ids.astype(jnp.int32)
    query_batch_idx = query_batch_idx.astype(jnp.int32)

    # ---- lane-dense output width + bf16 MXU/DMA operands -------------------
    if use_proj:
        P = params["wp"].shape[1]
        P_pad = _round_up(P, 128)
        wp = (jnp.zeros((D, P_pad), jnp.float32)
              .at[:, :P].set(params["wp"].astype(jnp.float32))
              .astype(jnp.bfloat16))
        bp = jnp.zeros((1, P_pad), jnp.float32).at[:, :P].set(
            params["bp"].reshape(1, P).astype(jnp.float32))
        wa = (jnp.zeros((1, P_pad), jnp.float32)
              .at[:, :P].set(params["wa"].reshape(1, P).astype(jnp.float32))
              .astype(jnp.bfloat16))
        x_in = encoded_input.astype(jnp.bfloat16)
        D_in = D
    else:
        P = D
        P_pad = _round_up(D, 128)
        # zero-pad the hidden dim itself so the span-sum output is lane dense;
        # padded columns contribute exact zeros everywhere.
        x_in = (jnp.zeros((B, T, P_pad), jnp.float32)
                .at[:, :, :D].set(encoded_input.astype(jnp.float32))
                .astype(jnp.bfloat16))
        wa = (jnp.zeros((1, P_pad), jnp.float32)
              .at[:, :D].set(params["wa"].reshape(1, D).astype(jnp.float32))
              .astype(jnp.bfloat16))
        D_in = P_pad
    ba = params["ba"].reshape(1, 1).astype(jnp.float32)

    # ---- group queries by batch row so every QT-tile uses a single row -----
    order = jnp.argsort(query_batch_idx)               # sorted query order
    sb = query_batch_idx[order]
    ss = start_ids[order]
    es = end_ids[order]

    counts = jnp.bincount(query_batch_idx, length=B).astype(jnp.int32)  # [B]
    padded_counts = ((counts + QT - 1) // QT) * QT
    group_off = jnp.concatenate(
        [jnp.zeros((1,), jnp.int32),
         jnp.cumsum(padded_counts)[:-1].astype(jnp.int32)])
    csum_excl = jnp.concatenate(
        [jnp.zeros((1,), jnp.int32), jnp.cumsum(counts)[:-1].astype(jnp.int32)])
    rank = jnp.arange(Q, dtype=jnp.int32) - csum_excl[sb]
    slot = group_off[sb] + rank                        # padded slot per sorted query

    # static upper bound on padded query count (each group rounded up to QT)
    S = pl.cdiv(Q + B * (QT - 1), QT) * QT
    num_tiles = S // QT

    # padded per-slot metadata; padding slots use a full span (finite softmax).
    # Trailing padding tiles inherit the LAST real batch row -> no extra DMA.
    last_b = sb[Q - 1]
    pstart = jnp.zeros((S,), jnp.int32).at[slot].set(ss)
    pend = jnp.full((S,), T - 1, jnp.int32).at[slot].set(es)
    pbatch = jnp.full((S,), last_b, dtype=jnp.int32).at[slot].set(sb)

    tile_batch = pbatch[0::QT]                                  # [num_tiles]
    se_meta = jnp.stack([pstart, pend], axis=-1).reshape(num_tiles, QT, 2)

    # where each *original* query lands in the padded layout
    slot_orig = jnp.zeros((Q,), jnp.int32).at[order].set(slot)

    # ---- specs --------------------------------------------------------------
    x_spec = pl.BlockSpec((1, T, D_in), lambda t, tb: (tb[t], 0, 0))
    se_spec = pl.BlockSpec((1, QT, 2), lambda t, tb: (t, 0, 0))
    w_map = lambda t, tb: (0, 0)

    in_specs = [x_spec, se_spec]
    args = [x_in, se_meta]
    if use_proj:
        in_specs += [pl.BlockSpec((D, P_pad), w_map),
                     pl.BlockSpec((1, P_pad), w_map)]
        args += [wp, bp]
    in_specs += [pl.BlockSpec((1, P_pad), w_map), pl.BlockSpec((1, 1), w_map)]
    args += [wa, ba]

    scratch = []
    if use_proj:
        scratch.append(pltpu.VMEM((T, P_pad), jnp.bfloat16))  # cached projected row
    scratch.append(pltpu.VMEM((1, T), jnp.float32))           # cached logits (lane-major)

    # ---- explicit VMEM budget (fits v7x 64 MiB as well as v5e/v6e 128 MiB) --
    vmem_est = (
        2 * T * D_in * 2                              # x double-buffer (bf16)
        + 2 * QT * 2 * 4                              # se metadata double-buffer
        + 2 * QT * P_pad * 4                          # output double-buffer (f32)
        + 2 * (D * P_pad * 2 + 2 * P_pad * 4 + 4)     # weights (conservative 2x)
        + (T * P_pad * 2 if use_proj else 0)          # cached projected row (bf16)
        + 8 * _round_up(T, 128) * 4                   # cached logits row
        + 6 * QT * _round_up(T, 128) * 4              # softmax value temporaries
    )
    vmem_limit = int(min(max(2 * vmem_est, 32 * 1024 * 1024),
                         100 * 1024 * 1024))

    kernel = functools.partial(_attn_span_kernel, use_proj)

    out_padded = pl.pallas_call(
        kernel,
        out_shape=jax.ShapeDtypeStruct((S, P_pad), jnp.float32),
        grid_spec=pltpu.PrefetchScalarGridSpec(
            num_scalar_prefetch=1,
            grid=(num_tiles,),
            in_specs=in_specs,
            out_specs=pl.BlockSpec((QT, P_pad), lambda t, tb: (t, 0)),
            scratch_shapes=scratch,
        ),
        # "arbitrary": the VMEM scratch cache (per-batch-row projection/logits)
        # is carried across grid steps, so the query-tile axis must run
        # sequentially on one core.
        compiler_params=pltpu.CompilerParams(
            dimension_semantics=("arbitrary",),
            vmem_limit_bytes=vmem_limit),
    )(tile_batch, *args)

    return out_padded[slot_orig][:, :P]


def attn_span_repr_reference(encoded_input, start_ids, end_ids,
                             query_batch_idx, params, use_proj=False):
    """Pure-JAX f32 reference mirroring the PyTorch forward."""
    x = encoded_input
    if use_proj:
        x = x @ params["wp"] + params["bp"]
    T = x.shape[1]
    tmp = jnp.arange(T)[None, :]
    span_mask = ((tmp >= start_ids[:, None]) &
                 (tmp <= end_ids[:, None])).astype(jnp.float32)[:, :, None]
    attn_mask = (1.0 - span_mask) * NEG_BIG
    xm = x[query_batch_idx]                             # [Q, T, D]
    logits = xm @ params["wa"] + params["ba"] + attn_mask
    wts = jax.nn.softmax(logits, axis=1)
    return jnp.sum(wts * xm, axis=1)


if __name__ == "__main__":
    # Small, deterministic test shapes
    B, T, D = 2, 8, 32          # batch, seq, hidden (input_dim)
    PROJ = 16                   # proj_dim
    Q = 4                       # number of query spans

    key = jax.random.PRNGKey(0)
    k_x, k_wp, k_bp, k_wa, k_ba = jax.random.split(key, 5)

    encoded_input = jax.random.normal(k_x, (B, T, D), dtype=jnp.float32)

    start_ids = jnp.array([0, 2, 1, 3], dtype=jnp.int32)
    end_ids = jnp.array([3, 5, 6, 7], dtype=jnp.int32)
    query_batch_idx = jnp.array([0, 1, 0, 1], dtype=jnp.int32)

    # Deterministic synthetic parameters (math orientation: x @ W + b)
    params = {
        "wp": 0.1 * jax.random.normal(k_wp, (D, PROJ), dtype=jnp.float32),
        "bp": 0.1 * jax.random.normal(k_bp, (PROJ,), dtype=jnp.float32),
        "wa": 0.1 * jax.random.normal(k_wa, (PROJ, 1), dtype=jnp.float32),
        "ba": 0.1 * jax.random.normal(k_ba, (1,), dtype=jnp.float32),
    }
    # params for the no-projection variant (attention over raw hidden dim)
    params_noproj = {
        "wa": 0.1 * jax.random.normal(k_wa, (D, 1), dtype=jnp.float32),
        "ba": params["ba"],
    }

    # bf16 MXU/DMA operands with f32 accumulation -> relaxed tolerance
    TOL = 3e-2

    # use_proj=True path
    out = attn_span_repr(encoded_input, start_ids, end_ids, query_batch_idx,
                         params, use_proj=True)
    out = jax.block_until_ready(out)
    ref = attn_span_repr_reference(encoded_input, start_ids, end_ids,
                                   query_batch_idx, params, use_proj=True)
    assert out.shape == (Q, PROJ)
    assert jnp.allclose(out, ref, atol=TOL, rtol=TOL)

    # use_proj=False path
    out2 = attn_span_repr(encoded_input, start_ids, end_ids, query_batch_idx,
                          params_noproj, use_proj=False)
    out2 = jax.block_until_ready(out2)
    ref2 = attn_span_repr_reference(encoded_input, start_ids, end_ids,
                                    query_batch_idx, params_noproj,
                                    use_proj=False)
    assert out2.shape == (Q, D)
    assert jnp.allclose(out2, ref2, atol=TOL, rtol=TOL)

    print("KERNEL_OK")
</pallas_src>

<mosaic_0001>
module attributes {stable_mosaic.version = 11 : i64} {
  func.func @_attn_span_kernel(%arg0: i32, %arg1: memref<3xi32, #tpu.memory_space<smem>>, %arg2: memref<1x8x32xbf16, #tpu.memory_space<vmem>>, %arg3: memref<1x128x2xi32, #tpu.memory_space<vmem>>, %arg4: memref<32x128xbf16, #tpu.memory_space<vmem>>, %arg5: memref<1x128xf32, #tpu.memory_space<vmem>>, %arg6: memref<1x128xbf16, #tpu.memory_space<vmem>>, %arg7: memref<1x1xf32, #tpu.memory_space<vmem>>, %arg8: memref<128x128xf32, #tpu.memory_space<vmem>>, %arg9: memref<8x128xbf16, #tpu.memory_space<vmem>>, %arg10: memref<1x8xf32, #tpu.memory_space<vmem>>) attributes {dimension_semantics = [#tpu.dimension_semantics<arbitrary>], iteration_bounds = array<i64: 3>, scalar_prefetch = 1 : i64, scratch_operands = 2 : i64, tpu.core_type = #tpu.core_type<tc>, window_params = [{transform_indices = @transform_0, window_bounds = array<i64: 1, 8, 32>}, {transform_indices = @transform_1, window_bounds = array<i64: 1, 128, 2>}, {pipeline_mode = #tpu.pipeline_mode<synchronous>, transform_indices = @transform_2, window_bounds = array<i64: 32, 128>}, {pipeline_mode = #tpu.pipeline_mode<synchronous>, transform_indices = @transform_3, window_bounds = array<i64: 1, 128>}, {pipeline_mode = #tpu.pipeline_mode<synchronous>, transform_indices = @transform_4, window_bounds = array<i64: 1, 128>}, {pipeline_mode = #tpu.pipeline_mode<synchronous>, transform_indices = @transform_5, window_bounds = array<i64: 1, 1>}, {transform_indices = @transform_6, window_bounds = array<i64: 128, 128>}]} {
    %c1_i32 = arith.constant 1 : i32
    %0 = arith.subi %arg0, %c1_i32 : i32
    %c0_i32 = arith.constant 0 : i32
    %1 = arith.maxsi %0, %c0_i32 : i32
    %2 = arith.index_cast %1 : i32 to index
    %3 = memref.load %arg1[%2] : memref<3xi32, #tpu.memory_space<smem>>
    %c0_i32_0 = arith.constant 0 : i32
    %4 = arith.cmpi eq, %arg0, %c0_i32_0 : i32
    %5 = arith.index_cast %arg0 : i32 to index
    %6 = memref.load %arg1[%5] : memref<3xi32, #tpu.memory_space<smem>>
    %7 = arith.cmpi ne, %6, %3 : i32
    %8 = arith.ori %4, %7 : i1
    %9 = arith.extui %8 : i1 to i32
    %c0_i32_1 = arith.constant 0 : i32
    %10 = arith.cmpi ne, %9, %c0_i32_1 : i32
    scf.if %10 {
      %c0_14 = arith.constant 0 : index
      %c0_15 = arith.constant 0 : index
      %c0_16 = arith.constant 0 : index
      %41 = vector.load %arg2[%c0_14, %c0_15, %c0_16] : memref<1x8x32xbf16, #tpu.memory_space<vmem>>, vector<1x8x32xbf16>
      %42 = vector.shape_cast %41 : vector<1x8x32xbf16> to vector<8x32xbf16>
      %c0_17 = arith.constant 0 : index
      %c0_18 = arith.constant 0 : index
      %43 = vector.load %arg4[%c0_17, %c0_18] : memref<32x128xbf16, #tpu.memory_space<vmem>>, vector<32x128xbf16>
      %cst_19 = arith.constant dense<0.000000e+00> : vector<8x128xf32>
      %44 = tpu.matmul %42, %43, %cst_19 {dimension_numbers = #tpu.dot_dimension_numbers<[1], [0], [0], [1], [0, 0, 1, 1], [], []>} : vector<8x32xbf16>, vector<32x128xbf16>, vector<8x128xf32> -> vector<8x128xf32>
      %c0_20 = arith.constant 0 : index
      %c0_21 = arith.constant 0 : index
      %45 = vector.load %arg5[%c0_20, %c0_21] : memref<1x128xf32, #tpu.memory_space<vmem>>, vector<1x128xf32>
      %46 = vector.broadcast %45 : vector<1x128xf32> to vector<8x128xf32>
      %47 = arith.addf %44, %46 : vector<8x128xf32>
      %48 = arith.truncf %47 : vector<8x128xf32> to vector<8x128xbf16>
      %c0_22 = arith.constant 0 : index
      %c0_23 = arith.constant 0 : index
      %49 = vector.load %arg9[%c0_22, %c0_23] : memref<8x128xbf16, #tpu.memory_space<vmem>>, vector<8x128xbf16>
      tpu.vector_store %arg9[%c0_22, %c0_23], %48 {strides = array<i32>} : memref<8x128xbf16, #tpu.memory_space<vmem>>, vector<8x128xbf16>,
      %c0_24 = arith.constant 0 : index
      %c0_25 = arith.constant 0 : index
      %50 = vector.load %arg6[%c0_24, %c0_25] : memref<1x128xbf16, #tpu.memory_space<vmem>>, vector<1x128xbf16>
      %cst_26 = arith.constant dense<0.000000e+00> : vector<1x8xf32>
      %51 = tpu.matmul %50, %48, %cst_26 {dimension_numbers = #tpu.dot_dimension_numbers<[1], [1], [0], [0], [0, 0, 1, 0], [], []>} : vector<1x128xbf16>, vector<8x128xbf16>, vector<1x8xf32> -> vector<1x8xf32>
      %c0_27 = arith.constant 0 : index
      %c0_28 = arith.constant 0 : index
      %52 = vector.load %arg7[%c0_27, %c0_28] : memref<1x1xf32, #tpu.memory_space<vmem>>, vector<1x1xf32>
      %53 = vector.broadcast %52 : vector<1x1xf32> to vector<1x8xf32>
      %54 = arith.addf %51, %53 : vector<1x8xf32>
      %c0_29 = arith.constant 0 : index
      %c0_30 = arith.constant 0 : index
      %55 = vector.load %arg10[%c0_29, %c0_30] : memref<1x8xf32, #tpu.memory_space<vmem>>, vector<1x8xf32>
      tpu.vector_store %arg10[%c0_29, %c0_30], %54 {strides = array<i32>} : memref<1x8xf32, #tpu.memory_space<vmem>>, vector<1x8xf32>,
    } else {
    }
    %c0 = arith.constant 0 : index
    %c0_2 = arith.constant 0 : index
    %11 = vector.load %arg9[%c0, %c0_2] : memref<8x128xbf16, #tpu.memory_space<vmem>>, vector<8x128xbf16>
    %c0_3 = arith.constant 0 : index
    %c0_4 = arith.constant 0 : index
    %12 = vector.load %arg10[%c0_3, %c0_4] : memref<1x8xf32, #tpu.memory_space<vmem>>, vector<1x8xf32>
    %c0_5 = arith.constant 0 : index
    %c0_6 = arith.constant 0 : index
    %c0_7 = arith.constant 0 : index
    %13 = vector.load %arg3[%c0_5, %c0_6, %c0_7] : memref<1x128x2xi32, #tpu.memory_space<vmem>>, vector<1x128x2xi32>
    %14 = vector.shape_cast %13 : vector<1x128x2xi32> to vector<128x2xi32>
    %15 = vector.extract_strided_slice %14 {offsets = [0, 0], sizes = [128, 1], strides = [1, 1]} : vector<128x2xi32> to vector<128x1xi32>
    %16 = vector.extract_strided_slice %14 {offsets = [0, 1], sizes = [128, 1], strides = [1, 1]} : vector<128x2xi32> to vector<128x1xi32>
    %17 = tpu.iota {dimensions = array<i32: 1>} : vector<128x8xi32>
    %18 = vector.broadcast %15 : vector<128x1xi32> to vector<128x8xi32>
    %19 = arith.cmpi sge, %17, %18 : vector<128x8xi32>
    %20 = vector.broadcast %16 : vector<128x1xi32> to vector<128x8xi32>
    %21 = arith.cmpi sle, %17, %20 : vector<128x8xi32>
    %22 = arith.andi %19, %21 : vector<128x8xi1>
    %cst = arith.constant 0.000000e+00 : f32
    %cst_8 = arith.constant -1.000000e+10 : f32
    %23 = vector.broadcast %cst : f32 to vector<128x8xf32>
    %24 = vector.broadcast %cst_8 : f32 to vector<128x8xf32>
    %25 = arith.select %22, %23, %24 : vector<128x8xi1>, vector<128x8xf32>
    %26 = vector.broadcast %12 : vector<1x8xf32> to vector<128x8xf32>
    %27 = arith.addf %26, %25 : vector<128x8xf32>
    %cst_9 = arith.constant dense<0xFF800000> : vector<128xf32>
    %28 = vector.multi_reduction <maximumf>, %27, %cst_9 [1] : vector<128x8xf32> to vector<128xf32>
    %29 = vector.shape_cast %28 : vector<128xf32> to vector<128x1xf32>
    %30 = vector.broadcast %29 : vector<128x1xf32> to vector<128x8xf32>
    %31 = arith.subf %27, %30 : vector<128x8xf32>
    %32 = math.exp %31 : vector<128x8xf32>
    %cst_10 = arith.constant dense<0.000000e+00> : vector<128xf32>
    %33 = vector.multi_reduction <add>, %32, %cst_10 [1] : vector<128x8xf32> to vector<128xf32>
    %34 = vector.shape_cast %33 : vector<128xf32> to vector<128x1xf32>
    %35 = tpu.reciprocal %34 : vector<128x1xf32> -> vector<128x1xf32>
    %36 = vector.broadcast %35 : vector<128x1xf32> to vector<128x8xf32>
    %37 = arith.mulf %32, %36 : vector<128x8xf32>
    %38 = arith.truncf %37 : vector<128x8xf32> to vector<128x8xbf16>
    %cst_11 = arith.constant dense<0.000000e+00> : vector<128x128xf32>
    %39 = tpu.matmul %38, %11, %cst_11 {dimension_numbers = #tpu.dot_dimension_numbers<[1], [0], [0], [1], [0, 0, 1, 1], [], []>} : vector<128x8xbf16>, vector<8x128xbf16>, vector<128x128xf32> -> vector<128x128xf32>
    %c0_12 = arith.constant 0 : index
    %c0_13 = arith.constant 0 : index
    %40 = vector.load %arg8[%c0_12, %c0_13] : memref<128x128xf32, #tpu.memory_space<vmem>>, vector<128x128xf32>
    tpu.vector_store %arg8[%c0_12, %c0_13], %39 {strides = array<i32>} : memref<128x128xf32, #tpu.memory_space<vmem>>, vector<128x128xf32>,
    return
  }
  func.func @transform_0(%arg0: i32, %arg1: memref<3xi32, #tpu.memory_space<smem>>) -> (i32, i32, i32) {
    %0 = arith.index_cast %arg0 : i32 to index
    %1 = memref.load %arg1[%0] : memref<3xi32, #tpu.memory_space<smem>>
    %c0_i32 = arith.constant 0 : i32
    %c0_i32_0 = arith.constant 0 : i32
    %c0_i32_1 = arith.constant 0 : i32
    return %1, %c0_i32, %c0_i32_0 : i32, i32, i32
  }
  func.func @transform_1(%arg0: i32, %arg1: memref<3xi32, #tpu.memory_space<smem>>) -> (i32, i32, i32) {
    %c0_i32 = arith.constant 0 : i32
    %c0_i32_0 = arith.constant 0 : i32
    %c0_i32_1 = arith.constant 0 : i32
    return %arg0, %c0_i32, %c0_i32_0 : i32, i32, i32
  }
  func.func @transform_2(%arg0: i32, %arg1: memref<3xi32, #tpu.memory_space<smem>>) -> (i32, i32) {
    %c0_i32 = arith.constant 0 : i32
    %c0_i32_0 = arith.constant 0 : i32
    %c0_i32_1 = arith.constant 0 : i32
    return %c0_i32, %c0_i32_0 : i32, i32
  }
  func.func @transform_3(%arg0: i32, %arg1: memref<3xi32, #tpu.memory_space<smem>>) -> (i32, i32) {
    %c0_i32 = arith.constant 0 : i32
    %c0_i32_0 = arith.constant 0 : i32
    %c0_i32_1 = arith.constant 0 : i32
    return %c0_i32, %c0_i32_0 : i32, i32
  }
  func.func @transform_4(%arg0: i32, %arg1: memref<3xi32, #tpu.memory_space<smem>>) -> (i32, i32) {
    %c0_i32 = arith.constant 0 : i32
    %c0_i32_0 = arith.constant 0 : i32
    %c0_i32_1 = arith.constant 0 : i32
    return %c0_i32, %c0_i32_0 : i32, i32
  }
  func.func @transform_5(%arg0: i32, %arg1: memref<3xi32, #tpu.memory_space<smem>>) -> (i32, i32) {
    %c0_i32 = arith.constant 0 : i32
    %c0_i32_0 = arith.constant 0 : i32
    %c0_i32_1 = arith.constant 0 : i32
    return %c0_i32, %c0_i32_0 : i32, i32
  }
  func.func @transform_6(%arg0: i32, %arg1: memref<3xi32, #tpu.memory_space<smem>>) -> (i32, i32) {
    %c0_i32 = arith.constant 0 : i32
    %c0_i32_0 = arith.constant 0 : i32
    return %arg0, %c0_i32 : i32, i32
  }
}

</mosaic_0001>

<llo_original>
// kernel: tpu_custom_call.1
$region0: #{tpu_custom_call.1}
  #allocation0 [shape = 'u32[]', space=smem, size = 0x4, offset = 0x4, fixed_abs, tag = 'smem constant byte address 0x4 - core index']
  #allocation1 [shape = 'u32[72,128]{1,0:T(1,128)}', space=vmem, size = 0x9000, scoped, tag = 'internal scratch']
  #allocation2 [shape = 'bf16[8,128]{1,0:T(8,128)(2,1)}', space=vmem, size = 0x800, scoped, tag = 'scratch operand']
  #allocation3 [shape = 'f32[1,8]{1,0:T(1,128)}', space=vmem, size = 0x200, scoped, tag = 'scratch operand']
  #allocation4 [shape = 's32[1]{0}', space=sflag, size = 0x4, scoped, tag = 'scoped memory for tpu_custom_call.1']
  #allocation5 [shape = 'u8[512]{0}', space=smem, size = 0x200, scoped, tag = 'prefetched SMEM operand 0']
  #allocation6 [shape = 'f32[1,1]{1,0:T(1,128)S(1)}', space=vmem, size = 0x200, scoped, tag = 'scoped memory for tpu_custom_call.1']
  %s0 = inlined_call_operand.vmem [shape: s32[3], index: 0, kind: input, shape index: {}]
  %s1 = inlined_call_operand.vmem [shape: bf16[2,8,32], index: 1, kind: input, shape index: {}]
  %s2 = inlined_call_operand.vmem [shape: s32[3,128,2], index: 2, kind: input, shape index: {}]
  %s3 = inlined_call_operand.vmem [shape: bf16[32,128], index: 3, kind: input, shape index: {}]
  %s4 = inlined_call_operand.vmem [shape: f32[1,128], index: 4, kind: input, shape index: {}]
  %s5 = inlined_call_operand.vmem [shape: bf16[1,128], index: 5, kind: input, shape index: {}]
  %s6 = inlined_call_operand.<no memory space> [shape: f32[1,1], index: 6, kind: input, shape index: {}]
  %s7 = inlined_call_operand.hbm [shape: f32[384,128], index: 7, kind: output, shape index: {}]
  %s8 = sld [smem:[#allocation0]]
  $region61: #{tpu_custom_call.1} parent=0
    _
  %s10 = ssub.s32 1, %s8
  %s11 = scalar_select 0, %s10, %s8
  %s13 = sshll.u32 %s0, 4
  %s14 = int_to_ptr.vmem [resolvable:$true] %s13
  %16 = dma.vmem_to_smem %s14, 16, [#allocation5], [#allocation4]
  %v17 = vstv %s6
  %18 = vst [vmem:[#allocation6] sm:$0x1] %v17
  %20 = dma.done [#allocation4], 16
  %21 = sfence
  $region1: #{tpu_custom_call.1} parent=0
    #allocation7 [shape = 'u8[131072]{0}', space=vmem, size = 0x20000, scoped, tag = 'output window, operand 0']
    #allocation8 [shape = 's32[2]{0}', space=sflag, size = 0x8, scoped, tag = 'scoped memory for tpu_custom_call.1']
    %22 = vsyncpa [#allocation8], 0
    %s23 = scalar_lea.sflag [#allocation8], 1
    %24 = vsyncpa %s23, 0
    loop: start=0, step=1, limit=5
    $region2: #{tpu_custom_call.1} parent=1 // loop_pre_header
      _
    $region3: #{tpu_custom_call.1} parent=1 // loop_header
      %s26 = sphi 0, %s30
      %p27 = scmp.ge.s32.totalorder %s26, 5
      %s38 = sphi 0, %s40
      %s41 = sphi 0, %s38
      %s42 = sphi 0, %s41
      %s58 = sphi 0, %s42
      %s64 = sphi 0, %s66
      %s67 = sphi 0, %s64
      %s68 = sphi 0, %s67
      %s84 = sphi 0, %s68
      %s88 = sphi 0, %s88
      %s90 = sphi 0, %s88
      %s91 = sphi 0, %s90
      %s105 = sphi 0, %s91
      %s109 = sphi 0, %s109
      %s111 = sphi 0, %s109
      %s112 = sphi 0, %s111
      %s126 = sphi 0, %s112
      %s130 = sphi 0, %s130
      %s132 = sphi 0, %s130
      %s133 = sphi 0, %s132
      %s147 = sphi 0, %s133
      %s151 = sphi 0, %s151
      %s153 = sphi 0, %s151
      %s154 = sphi 0, %s153
      %s168 = sphi 0, %s154
      %s174 = sphi 0, %s176
      %s177 = sphi 0, %s174
      %s178 = sphi 0, %s177
      %s194 = sphi 0, %s178
    $region4: #{tpu_custom_call.1} parent=1 // loop_header_branch
      %29 = sbr.rel (%p27) target = $region8
    $region5: #{tpu_custom_call.1} parent=1 // loop_body
      %s31 = ssub.s32 %s26, 1
      %s32 = ssub.s32 %s26, 2
      %s33 = sadd.s32 %s26, 1
      %s34 = sld [smem:[#allocation5 + %s26]]
      %s35 = sld [smem:[#allocation5 + %s33]]
      %s36 = ssub.s32 %s34, %s35
      %p37 = scmp.eq.s32.totalorder %s36, 0
      %s39 = sadd.s32 %s38, 1
      %s40 = scalar_select %p37, %s38, %s39
      %p43 = pneg %p37
      %p44 = scmp.eq.s32.totalorder %s26, 2
      %p45 = por %p43, %p44
      %p46 = scmp.ne.s32.totalorder %s38, %s41
      %p47 = scmp.eq.s32.totalorder %s26, 0
      %p48 = por %p46, %p47
      %p49 = scmp.ne.s32.totalorder %s38, %s41
      %p50 = scmp.eq.s32.totalorder %s31, 2
      %p51 = por %p49, %p50
      %p52 = scmp.ne.s32.totalorder %s41, %s42
      %p53 = scmp.eq.s32.totalorder %s31, 0
      %p54 = por %p52, %p53
      %p55 = scmp.ne.s32.totalorder %s41, %s42
      %p56 = scmp.eq.s32.totalorder %s32, 2
      %p57 = por %p55, %p56
      %p59 = scmp.ne.s32.totalorder %s42, %s58
      %p60 = scmp.eq.s32.totalorder %s32, 0
      %p61 = por %p59, %p60
      %s62 = ssub.s32 %s26, %s33
      %p63 = scmp.eq.s32.totalorder %s62, 0
      %s65 = sadd.s32 %s64, 1
      %s66 = scalar_select %p63, %s64, %s65
      %p69 = pneg %p63
      %p70 = scmp.eq.s32.totalorder %s26, 2
      %p71 = por %p69, %p70
      %p72 = scmp.ne.s32.totalorder %s64, %s67
      %p73 = scmp.eq.s32.totalorder %s26, 0
      %p74 = por %p72, %p73
      %p75 = scmp.ne.s32.totalorder %s64, %s67
      %p76 = scmp.eq.s32.totalorder %s31, 2
      %p77 = por %p75, %p76
      %p78 = scmp.ne.s32.totalorder %s67, %s68
      %p79 = scmp.eq.s32.totalorder %s31, 0
      %p80 = por %p78, %p79
      %p81 = scmp.ne.s32.totalorder %s67, %s68
      %p82 = scmp.eq.s32.totalorder %s32, 2
      %p83 = por %p81, %p82
      %p85 = scmp.ne.s32.totalorder %s68, %s84
      %p86 = scmp.eq.s32.totalorder %s32, 0
      %p87 = por %p85, %p86
      %s89 = sadd.s32 %s88, 1
      %p92 = scmp.eq.s32.totalorder %s26, 2
      %p93 = scmp.ne.s32.totalorder %s88, %s90
      %p94 = scmp.eq.s32.totalorder %s26, 0
      %p95 = por %p93, %p94
      %p96 = scmp.ne.s32.totalorder %s88, %s90
      %p97 = scmp.eq.s32.totalorder %s31, 2
      %p98 = por %p96, %p97
      %p99 = scmp.ne.s32.totalorder %s90, %s91
      %p100 = scmp.eq.s32.totalorder %s31, 0
      %p101 = por %p99, %p100
      %p102 = scmp.ne.s32.totalorder %s90, %s91
      %p103 = scmp.eq.s32.totalorder %s32, 2
      %p104 = por %p102, %p103
      %p106 = scmp.ne.s32.totalorder %s91, %s105
      %p107 = scmp.eq.s32.totalorder %s32, 0
      %p108 = por %p106, %p107
      %s110 = sadd.s32 %s109, 1
      %p113 = scmp.eq.s32.totalorder %s26, 2
      %p114 = scmp.ne.s32.totalorder %s109, %s111
      %p115 = scmp.eq.s32.totalorder %s26, 0
      %p116 = por %p114, %p115
      %p117 = scmp.ne.s32.totalorder %s109, %s111
      %p118 = scmp.eq.s32.totalorder %s31, 2
      %p119 = por %p117, %p118
      %p120 = scmp.ne.s32.totalorder %s111, %s112
      %p121 = scmp.eq.s32.totalorder %s31, 0
      %p122 = por %p120, %p121
      %p123 = scmp.ne.s32.totalorder %s111, %s112
      %p124 = scmp.eq.s32.totalorder %s32, 2
      %p125 = por %p123, %p124
      %p127 = scmp.ne.s32.totalorder %s112, %s126
      %p128 = scmp.eq.s32.totalorder %s32, 0
      %p129 = por %p127, %p128
      %s131 = sadd.s32 %s130, 1
      %p134 = scmp.eq.s32.totalorder %s26, 2
      %p135 = scmp.ne.s32.totalorder %s130, %s132
      %p136 = scmp.eq.s32.totalorder %s26, 0
      %p137 = por %p135, %p136
      %p138 = scmp.ne.s32.totalorder %s130, %s132
      %p139 = scmp.eq.s32.totalorder %s31, 2
      %p140 = por %p138, %p139
      %p141 = scmp.ne.s32.totalorder %s132, %s133
      %p142 = scmp.eq.s32.totalorder %s31, 0
      %p143 = por %p141, %p142
      %p144 = scmp.ne.s32.totalorder %s132, %s133
      %p145 = scmp.eq.s32.totalorder %s32, 2
      %p146 = por %p144, %p145
      %p148 = scmp.ne.s32.totalorder %s133, %s147
      %p149 = scmp.eq.s32.totalorder %s32, 0
      %p150 = por %p148, %p149
      %s152 = sadd.s32 %s151, 1
      %p155 = scmp.eq.s32.totalorder %s26, 2
      %p156 = scmp.ne.s32.totalorder %s151, %s153
      %p157 = scmp.eq.s32.totalorder %s26, 0
      %p158 = por %p156, %p157
      %p159 = scmp.ne.s32.totalorder %s151, %s153
      %p160 = scmp.eq.s32.totalorder %s31, 2
      %p161 = por %p159, %p160
      %p162 = scmp.ne.s32.totalorder %s153, %s154
      %p163 = scmp.eq.s32.totalorder %s31, 0
      %p164 = por %p162, %p163
      %p165 = scmp.ne.s32.totalorder %s153, %s154
      %p166 = scmp.eq.s32.totalorder %s32, 2
      %p167 = por %p165, %p166
      %p169 = scmp.ne.s32.totalorder %s154, %s168
      %p170 = scmp.eq.s32.totalorder %s32, 0
      %p171 = por %p169, %p170
      %s172 = ssub.s32 %s26, %s33
      %p173 = scmp.eq.s32.totalorder %s172, 0
      %s175 = sadd.s32 %s174, 1
      %s176 = scalar_select %p173, %s174, %s175
      %p179 = pneg %p173
      %p180 = scmp.eq.s32.totalorder %s26, 2
      %p181 = por %p179, %p180
      %p182 = scmp.ne.s32.totalorder %s174, %s177
      %p183 = scmp.eq.s32.totalorder %s26, 0
      %p184 = por %p182, %p183
      %p185 = scmp.ne.s32.totalorder %s174, %s177
      %p186 = scmp.eq.s32.totalorder %s31, 2
      %p187 = por %p185, %p186
      %p188 = scmp.ne.s32.totalorder %s177, %s178
      %p189 = scmp.eq.s32.totalorder %s31, 0
      %p190 = por %p188, %p189
      %p191 = scmp.ne.s32.totalorder %s177, %s178
      %p192 = scmp.eq.s32.totalorder %s32, 2
      %p193 = por %p191, %p192
      %p195 = scmp.ne.s32.totalorder %s178, %s194
      %p196 = scmp.eq.s32.totalorder %s32, 0
      %p197 = por %p195, %p196
      %p198 = scmp.le.s32.totalorder 1, %s26
      %p199 = scmp.lt.s32.totalorder %s26, 4
      %p200 = pnand %p198, %p199
      %p201 = pneg %p200
      // Predicated region
      $region9: #{tpu_custom_call.1} parent=5 // pred_check
        _
      $region10: #{tpu_custom_call.1} parent=5 // pred_check_branch
        %203 = sbr.rel (%p200) target = $region12
      $region11: #{tpu_custom_call.1} parent=5 // pred_region
        %s204 = ssub.s32 %s26, 1
        // Predicated region
        $region13: #{tpu_custom_call.1} parent=11 // pred_check
          %p205 = pneg %p101
        $region14: #{tpu_custom_call.1} parent=11 // pred_check_branch
          %207 = sbr.rel (%p205) target = $region16
        $region15: #{tpu_custom_call.1} parent=11 // pred_region
          _
        $region16: #{tpu_custom_call.1} parent=11 // pred_fallthru
          _
        // Predicated region
        $region17: #{tpu_custom_call.1} parent=11 // pred_check
          %p208 = pneg %p122
        $region18: #{tpu_custom_call.1} parent=11 // pred_check_branch
          %210 = sbr.rel (%p208) target = $region20
        $region19: #{tpu_custom_call.1} parent=11 // pred_region
          _
        $region20: #{tpu_custom_call.1} parent=11 // pred_fallthru
          _
        // Predicated region
        $region21: #{tpu_custom_call.1} parent=11 // pred_check
          %p211 = pneg %p143
        $region22: #{tpu_custom_call.1} parent=11 // pred_check_branch
          %213 = sbr.rel (%p211) target = $region24
        $region23: #{tpu_custom_call.1} parent=11 // pred_region
          _
        $region24: #{tpu_custom_call.1} parent=11 // pred_fallthru
          _
        // Predicated region
        $region25: #{tpu_custom_call.1} parent=11 // pred_check
          %p214 = pneg %p164
        $region26: #{tpu_custom_call.1} parent=11 // pred_check_branch
          %216 = sbr.rel (%p214) target = $region28
        $region27: #{tpu_custom_call.1} parent=11 // pred_region
          _
        $region28: #{tpu_custom_call.1} parent=11 // pred_fallthru
          _
      $region12: #{tpu_custom_call.1} parent=5 // pred_fallthru
        _
      %p217 = scmp.lt.s32.totalorder %s26, 3
      // Predicated region
      $region29: #{tpu_custom_call.1} parent=5 // pred_check
        %p218 = pneg %p217
      $region30: #{tpu_custom_call.1} parent=5 // pred_check_branch
        %220 = sbr.rel (%p218) target = $region32
      $region31: #{tpu_custom_call.1} parent=5 // pred_region
        // Predicated region
        $region33: #{tpu_custom_call.1} parent=31 // pred_check
          %p221 = pneg %p48
        $region34: #{tpu_custom_call.1} parent=31 // pred_check_branch
          %223 = sbr.rel (%p221) target = $region36
        $region35: #{tpu_custom_call.1} parent=31 // pred_region
          %s224 = sld [smem:[#allocation5 + %s26]]
          %p225 = scmp.lt.s32.totalorder %s224, 1
          %s226 = scalar_select %p225, %s224, 1
          %s227 = smul.addr %s226, 4
          %s228 = scalar_lea.vmem %s1, %s227
          %s229 = sld [smem:[#allocation5 + %s26]]
        $region36: #{tpu_custom_call.1} parent=31 // pred_fallthru
          _
        // Predicated region
        $region37: #{tpu_custom_call.1} parent=31 // pred_check
          %p230 = pneg %p74
        $region38: #{tpu_custom_call.1} parent=31 // pred_check_branch
          %232 = sbr.rel (%p230) target = $region40
        $region39: #{tpu_custom_call.1} parent=31 // pred_region
          %p233 = scmp.lt.s32.totalorder %s26, 2
          %s234 = scalar_select %p233, %s26, 2
          %s235 = smul.addr %s234, 16
          %s236 = smul.addr %s235, 8
          %s237 = scalar_lea.vmem %s2, %s236
        $region40: #{tpu_custom_call.1} parent=31 // pred_fallthru
          _
      $region32: #{tpu_custom_call.1} parent=5 // pred_fallthru
        _
      %p238 = scmp.le.s32.totalorder 1, %s26
      %p239 = scmp.lt.s32.totalorder %s26, 4
      %p240 = pnand %p238, %p239
      %p241 = pneg %p240
      // Predicated region
      $region41: #{tpu_custom_call.1} parent=5 // pred_check
        _
      $region42: #{tpu_custom_call.1} parent=5 // pred_check_branch
        %243 = sbr.rel (%p240) target = $region44
      $region43: #{tpu_custom_call.1} parent=5 // pred_region
        %s244 = ssub.s32 %s26, 1
        %s245 = sld [smem:[#allocation5 + %s31]]
        %p246 = scmp.lt.s32.totalorder %s245, 1
        %s247 = scalar_select %p246, %s245, 1
        %s248 = smul.addr %s247, 4
        %s249 = scalar_lea.vmem %s1, %s248
        %p250 = pneg %p54
        %p251 = pneg %p51
        %p252 = scmp.lt.s32.totalorder %s31, 2
        %s253 = scalar_select %p252, %s31, 2
        %s254 = smul.addr %s253, 16
        %s255 = smul.addr %s254, 8
        %s256 = scalar_lea.vmem %s2, %s255
        %p257 = pneg %p80
        %p258 = pneg %p77
        %p259 = pneg %p101
        %p260 = pneg %p98
        %p261 = pneg %p122
        %p262 = pneg %p119
        %p263 = pneg %p143
        %p264 = pneg %p140
        %p265 = pneg %p164
        %p266 = pneg %p161
        %p267 = pneg %p190
        %p268 = pneg %p187
        %s269 = sand.u32 %s177, 1
        %s270 = scalar_lea.sflag [#allocation8], %s269
        %s271 = sand.u32 %s177, 1
        %s272 = smul.addr %s271, 128
        %s273 = scalar_lea.vmem [#allocation7], %s272
        %s274 = sld [smem:[#allocation5 + %s31]]
        %p275 = scmp.lt.s32.totalorder %s274, 1
        %s276 = scalar_select %p275, %s274, 1
        %s277 = smul.addr %s276, 4
        %s278 = scalar_lea.vmem %s1, %s277
        %s279 = sld [smem:[#allocation5 + %s31]]
        %p280 = scmp.lt.s32.totalorder %s31, 2
        %s281 = scalar_select %p280, %s31, 2
        %s282 = smul.addr %s281, 16
        %s283 = smul.addr %s282, 8
        %s284 = scalar_lea.vmem %s2, %s283
        %s285 = smul.u32 16, %s31
        %s287 = ssub.s32 %s31, 1
        %p288 = scmp.gt.s32.totalorder %s287, 0
        %s289 = scalar_select %p288, %s287, 0
        %s290 = sld [smem:[#allocation5 + %s289]]
        %p291 = scmp.eq.s32.totalorder %s31, 0
        %s292 = sld [smem:[#allocation5 + %s31]]
        %p293 = scmp.ne.s32.totalorder %s292, %s290
        %p294 = por %p291, %p293
        // Predicated region
        $region45: #{tpu_custom_call.1} parent=43 // pred_check
          %p295 = pneg %p294
        $region46: #{tpu_custom_call.1} parent=43 // pred_check_branch
          %297 = sbr.rel (%p295) target = $region48
        $region47: #{tpu_custom_call.1} parent=43 // pred_region
          %v298 = vld [vmem:[%s278] sm:$0xf]
          %v299 = vld [vmem:[%s3] sm:$0xf]
          %v300 = vld [vmem:[%s3 + $0x4] sm:$0xf]
          %v301 = vld [vmem:[%s3 + $0x8] sm:$0xf]
          %v302 = vld [vmem:[%s3 + $0xc] sm:$0xf]
          %v303 = vld [vmem:[%s4] sm:$0x1]
          %v305 = vperm.slane %v303, 0
          %v311 = vunpack.c.l.b16 %v299
          %v312 = vunpack.c.l.b16 %v300
          %v313 = vunpack.c.l.b16 %v301
          %v314 = vunpack.c.l.b16 %v302
          %v315 = vpack.c.b16 %v312, %v311
          %v316 = vpack.c.b16 %v314, %v313
          %vm319 = vcmask 261120
          %v321 = vsel %vm319, %v298, 0
          %323 = vmatpush.bf16.msra.mxu0 0
          %324 = vmatpush.bf16.msra.mxu0 0
          %325 = vmatpush.bf16.msra.mxu0 0
          %326 = vmatpush.bf16.msra.mxu0 0
          %327 = vmatpush.bf16.msra.mxu0 0
          %328 = vmatpush.bf16.msra.mxu0 0
          %329 = vmatpush.bf16.msra.mxu0 %v316
          %330 = vmatpush.bf16.msra.mxu0 %v315
          %331 = vmatmul.bf16.gmra.mxu0 %v321
          %v332 = vpop.f32.mrf.mxu0
          %v333 = vadd.f32 %v305, %v332
          %v334 = vpop.f32.mrf.mxu0
          %335 = vdwg.mxu0
          %v336 = vpack.c.bf16 %v333, %v333
          %337 = vst [vmem:[#allocation2] sm:$0xf] %v336
          %v338 = vld [vmem:[%s5] sm:$0x1]
          %v339 = vld [vmem:[#allocation6] sm:$0x1]
          %341 = vset.pattern.permute.xlu0 0
          %342 = vperm.xlu0 %341, %v339
          %v343 = vpop.permute.xlu0 %342
          %v345 = vperm.slane %v343, 0
          %346 = vmatpush.bf16.xpose.msra.mxu0 0
          %347 = vmatpush.bf16.xpose.msra.mxu0 0
          %348 = vmatpush.bf16.xpose.msra.mxu0 0
          %349 = vmatpush.bf16.xpose.msra.mxu0 0
          %350 = vmatpush.bf16.xpose.msra.mxu0 0
          %351 = vmatpush.bf16.xpose.msra.mxu0 0
          %352 = vmatpush.bf16.xpose.msra.mxu0 0
          %353 = vmatpush.bf16.xpose.msra.mxu0 %v336
          %354 = vmatmul.bf16.gmra.mxu0 %v338
          %v355 = vpop.f32.mrf.mxu0
          %v356 = vadd.f32 %v345, %v355
          %v357 = vpop.f32.mrf.mxu0
          %358 = vdwg.mxu0
          %vm359 = vcmask 57344
          %360 = vst.msk [vmem:[#allocation3] sm:$0x1] %vm359, %v356
        $region48: #{tpu_custom_call.1} parent=43 // pred_fallthru
          _
        %v361 = vld [vmem:[#allocation2] sm:$0xf]
        %v362 = vld [vmem:[#allocation3] sm:$0x1]
        %v363 = vld [vmem:[%s284] sm:$0xff]
        %v364 = vld [vmem:[%s284 + $0x8] sm:$0xff]
        %v365 = vld [vmem:[%s284 + $0x10] sm:$0xff]
        %v366 = vld [vmem:[%s284 + $0x18] sm:$0xff]
        %v367 = vld [vmem:[%s284 + $0x20] sm:$0xff]
        %v368 = vld [vmem:[%s284 + $0x28] sm:$0xff]
        %v369 = vld [vmem:[%s284 + $0x30] sm:$0xff]
        %v370 = vld [vmem:[%s284 + $0x38] sm:$0xff]
        %v371 = vld [vmem:[%s284 + $0x40] sm:$0xff]
        %v372 = vld [vmem:[%s284 + $0x48] sm:$0xff]
        %v373 = vld [vmem:[%s284 + $0x50] sm:$0xff]
        %v374 = vld [vmem:[%s284 + $0x58] sm:$0xff]
        %v375 = vld [vmem:[%s284 + $0x60] sm:$0xff]
        %v376 = vld [vmem:[%s284 + $0x68] sm:$0xff]
        %v377 = vld [vmem:[%s284 + $0x70] sm:$0xff]
        %v378 = vld [vmem:[%s284 + $0x78] sm:$0xff]
        %v379 = vlaneseq
        %v380 = vand.u32 %v379, 127
        %381 = vset.pattern.permute.xlu0 0
        %382 = vperm.xlu0 %381, %v363
        %v383 = vpop.permute.xlu0 %382
        %384 = vset.pattern.permute.xlu0 0
        %385 = vperm.xlu0 %384, %v364
        %v386 = vpop.permute.xlu0 %385
        %387 = vset.pattern.permute.xlu0 0
        %388 = vperm.xlu0 %387, %v365
        %v389 = vpop.permute.xlu0 %388
        %390 = vset.pattern.permute.xlu0 0
        %391 = vperm.xlu0 %390, %v366
        %v392 = vpop.permute.xlu0 %391
        %393 = vset.pattern.permute.xlu0 0
        %394 = vperm.xlu0 %393, %v367
        %v395 = vpop.permute.xlu0 %394
        %396 = vset.pattern.permute.xlu0 0
        %397 = vperm.xlu0 %396, %v368
        %v398 = vpop.permute.xlu0 %397
        %399 = vset.pattern.permute.xlu0 0
        %400 = vperm.xlu0 %399, %v369
        %v401 = vpop.permute.xlu0 %400
        %402 = vset.pattern.permute.xlu0 0
        %403 = vperm.xlu0 %402, %v370
        %v404 = vpop.permute.xlu0 %403
        %405 = vset.pattern.permute.xlu0 0
        %406 = vperm.xlu0 %405, %v371
        %v407 = vpop.permute.xlu0 %406
        %408 = vset.pattern.permute.xlu0 0
        %409 = vperm.xlu0 %408, %v372
        %v410 = vpop.permute.xlu0 %409
        %411 = vset.pattern.permute.xlu0 0
        %412 = vperm.xlu0 %411, %v373
        %v413 = vpop.permute.xlu0 %412
        %414 = vset.pattern.permute.xlu0 0
        %415 = vperm.xlu0 %414, %v374
        %v416 = vpop.permute.xlu0 %415
        %417 = vset.pattern.permute.xlu0 0
        %418 = vperm.xlu0 %417, %v375
        %v419 = vpop.permute.xlu0 %418
        %420 = vset.pattern.permute.xlu0 0
        %421 = vperm.xlu0 %420, %v376
        %v422 = vpop.permute.xlu0 %421
        %423 = vset.pattern.permute.xlu0 0
        %424 = vperm.xlu0 %423, %v377
        %v425 = vpop.permute.xlu0 %424
        %426 = vset.pattern.permute.xlu0 0
        %427 = vperm.xlu0 %426, %v378
        %v428 = vpop.permute.xlu0 %427
        %vm429 = vcmp.ge.s32.totalorder %v380, %v383
        %vm430 = vcmp.ge.s32.totalorder %v380, %v386
        %vm431 = vcmp.ge.s32.totalorder %v380, %v389
        %vm432 = vcmp.ge.s32.totalorder %v380, %v392
        %vm433 = vcmp.ge.s32.totalorder %v380, %v395
        %vm434 = vcmp.ge.s32.totalorder %v380, %v398
        %vm435 = vcmp.ge.s32.totalorder %v380, %v401
        %vm436 = vcmp.ge.s32.totalorder %v380, %v404
        %vm437 = vcmp.ge.s32.totalorder %v380, %v407
        %vm438 = vcmp.ge.s32.totalorder %v380, %v410
        %vm439 = vcmp.ge.s32.totalorder %v380, %v413
        %vm440 = vcmp.ge.s32.totalorder %v380, %v416
        %vm441 = vcmp.ge.s32.totalorder %v380, %v419
        %vm442 = vcmp.ge.s32.totalorder %v380, %v422
        %vm443 = vcmp.ge.s32.totalorder %v380, %v425
        %vm444 = vcmp.ge.s32.totalorder %v380, %v428
        %445 = vset.pattern.permute.xlu0 1
        %446 = vperm.xlu0 %445, %v363
        %v447 = vpop.permute.xlu0 %446
        %448 = vset.pattern.permute.xlu0 1
        %449 = vperm.xlu0 %448, %v364
        %v450 = vpop.permute.xlu0 %449
        %451 = vset.pattern.permute.xlu0 1
        %452 = vperm.xlu0 %451, %v365
        %v453 = vpop.permute.xlu0 %452
        %454 = vset.pattern.permute.xlu0 1
        %455 = vperm.xlu0 %454, %v366
        %v456 = vpop.permute.xlu0 %455
        %457 = vset.pattern.permute.xlu0 1
        %458 = vperm.xlu0 %457, %v367
        %v459 = vpop.permute.xlu0 %458
        %460 = vset.pattern.permute.xlu0 1
        %461 = vperm.xlu0 %460, %v368
        %v462 = vpop.permute.xlu0 %461
        %463 = vset.pattern.permute.xlu0 1
        %464 = vperm.xlu0 %463, %v369
        %v465 = vpop.permute.xlu0 %464
        %466 = vset.pattern.permute.xlu0 1
        %467 = vperm.xlu0 %466, %v370
        %v468 = vpop.permute.xlu0 %467
        %469 = vset.pattern.permute.xlu0 1
        %470 = vperm.xlu0 %469, %v371
        %v471 = vpop.permute.xlu0 %470
        %472 = vset.pattern.permute.xlu0 1
        %473 = vperm.xlu0 %472, %v372
        %v474 = vpop.permute.xlu0 %473
        %475 = vset.pattern.permute.xlu0 1
        %476 = vperm.xlu0 %475, %v373
        %v477 = vpop.permute.xlu0 %476
        %478 = vset.pattern.permute.xlu0 1
        %479 = vperm.xlu0 %478, %v374
        %v480 = vpop.permute.xlu0 %479
        %481 = vset.pattern.permute.xlu0 1
        %482 = vperm.xlu0 %481, %v375
        %v483 = vpop.permute.xlu0 %482
        %484 = vset.pattern.permute.xlu0 1
        %485 = vperm.xlu0 %484, %v376
        %v486 = vpop.permute.xlu0 %485
        %487 = vset.pattern.permute.xlu0 1
        %488 = vperm.xlu0 %487, %v377
        %v489 = vpop.permute.xlu0 %488
        %490 = vset.pattern.permute.xlu0 1
        %491 = vperm.xlu0 %490, %v378
        %v492 = vpop.permute.xlu0 %491
        %vm493 = vcmp.le.s32.totalorder %v380, %v447
        %vm494 = vcmp.le.s32.totalorder %v380, %v450
        %vm495 = vcmp.le.s32.totalorder %v380, %v453
        %vm496 = vcmp.le.s32.totalorder %v380, %v456
        %vm497 = vcmp.le.s32.totalorder %v380, %v459
        %vm498 = vcmp.le.s32.totalorder %v380, %v462
        %vm499 = vcmp.le.s32.totalorder %v380, %v465
        %vm500 = vcmp.le.s32.totalorder %v380, %v468
        %vm501 = vcmp.le.s32.totalorder %v380, %v471
        %vm502 = vcmp.le.s32.totalorder %v380, %v474
        %vm503 = vcmp.le.s32.totalorder %v380, %v477
        %vm504 = vcmp.le.s32.totalorder %v380, %v480
        %vm505 = vcmp.le.s32.totalorder %v380, %v483
        %vm506 = vcmp.le.s32.totalorder %v380, %v486
        %vm507 = vcmp.le.s32.totalorder %v380, %v489
        %vm508 = vcmp.le.s32.totalorder %v380, %v492
        %vm509 = vmand %vm429, %vm493
        %vm510 = vmand %vm430, %vm494
        %vm511 = vmand %vm431, %vm495
        %vm512 = vmand %vm432, %vm496
        %vm513 = vmand %vm433, %vm497
        %vm514 = vmand %vm434, %vm498
        %vm515 = vmand %vm435, %vm499
        %vm516 = vmand %vm436, %vm500
        %vm517 = vmand %vm437, %vm501
        %vm518 = vmand %vm438, %vm502
        %vm519 = vmand %vm439, %vm503
        %vm520 = vmand %vm440, %vm504
        %vm521 = vmand %vm441, %vm505
        %vm522 = vmand %vm442, %vm506
        %vm523 = vmand %vm443, %vm507
        %vm524 = vmand %vm444, %vm508
        %v525 = vsel %vm509, 0.0, -1e+10
        %v526 = vsel %vm510, 0.0, -1e+10
        %v527 = vsel %vm511, 0.0, -1e+10
        %v528 = vsel %vm512, 0.0, -1e+10
        %v529 = vsel %vm513, 0.0, -1e+10
        %v530 = vsel %vm514, 0.0, -1e+10
        %v531 = vsel %vm515, 0.0, -1e+10
        %v532 = vsel %vm516, 0.0, -1e+10
        %v533 = vsel %vm517, 0.0, -1e+10
        %v534 = vsel %vm518, 0.0, -1e+10
        %v535 = vsel %vm519, 0.0, -1e+10
        %v536 = vsel %vm520, 0.0, -1e+10
        %v537 = vsel %vm521, 0.0, -1e+10
        %v538 = vsel %vm522, 0.0, -1e+10
        %v539 = vsel %vm523, 0.0, -1e+10
        %v540 = vsel %vm524, 0.0, -1e+10
        %v542 = vperm.slane %v362, 0
        %v544 = vadd.f32 %v542, %v525
        %v545 = vadd.f32 %v542, %v526
        %v546 = vadd.f32 %v542, %v527
        %v547 = vadd.f32 %v542, %v528
        %v548 = vadd.f32 %v542, %v529
        %v549 = vadd.f32 %v542, %v530
        %v550 = vadd.f32 %v542, %v531
        %v551 = vadd.f32 %v542, %v532
        %v552 = vadd.f32 %v542, %v533
        %v553 = vadd.f32 %v542, %v534
        %v554 = vadd.f32 %v542, %v535
        %v555 = vadd.f32 %v542, %v536
        %v556 = vadd.f32 %v542, %v537
        %v557 = vadd.f32 %v542, %v538
        %v558 = vadd.f32 %v542, %v539
        %v559 = vadd.f32 %v542, %v540
        %vm560 = vcmask 64512
        %v561 = vsel %vm560, %v544, -inf
        %562 = vmax.xlane.f32.xlu0 %v561
        %v563 = vpop.xlane.xlu0 %562
        %v564 = vsel %vm560, %v545, -inf
        %565 = vmax.xlane.f32.xlu0 %v564
        %v566 = vpop.xlane.xlu0 %565
        %v567 = vsel %vm560, %v546, -inf
        %568 = vmax.xlane.f32.xlu0 %v567
        %v569 = vpop.xlane.xlu0 %568
        %v570 = vsel %vm560, %v547, -inf
        %571 = vmax.xlane.f32.xlu0 %v570
        %v572 = vpop.xlane.xlu0 %571
        %v573 = vsel %vm560, %v548, -inf
        %574 = vmax.xlane.f32.xlu0 %v573
        %v575 = vpop.xlane.xlu0 %574
        %v576 = vsel %vm560, %v549, -inf
        %577 = vmax.xlane.f32.xlu0 %v576
        %v578 = vpop.xlane.xlu0 %577
        %v579 = vsel %vm560, %v550, -inf
        %580 = vmax.xlane.f32.xlu0 %v579
        %v581 = vpop.xlane.xlu0 %580
        %v582 = vsel %vm560, %v551, -inf
        %583 = vmax.xlane.f32.xlu0 %v582
        %v584 = vpop.xlane.xlu0 %583
        %v585 = vsel %vm560, %v552, -inf
        %586 = vmax.xlane.f32.xlu0 %v585
        %v587 = vpop.xlane.xlu0 %586
        %v588 = vsel %vm560, %v553, -inf
        %589 = vmax.xlane.f32.xlu0 %v588
        %v590 = vpop.xlane.xlu0 %589
        %v591 = vsel %vm560, %v554, -inf
        %592 = vmax.xlane.f32.xlu0 %v591
        %v593 = vpop.xlane.xlu0 %592
        %v594 = vsel %vm560, %v555, -inf
        %595 = vmax.xlane.f32.xlu0 %v594
        %v596 = vpop.xlane.xlu0 %595
        %v597 = vsel %vm560, %v556, -inf
        %598 = vmax.xlane.f32.xlu0 %v597
        %v599 = vpop.xlane.xlu0 %598
        %v600 = vsel %vm560, %v557, -inf
        %601 = vmax.xlane.f32.xlu0 %v600
        %v602 = vpop.xlane.xlu0 %601
        %v603 = vsel %vm560, %v558, -inf
        %604 = vmax.xlane.f32.xlu0 %v603
        %v605 = vpop.xlane.xlu0 %604
        %v606 = vsel %vm560, %v559, -inf
        %607 = vmax.xlane.f32.xlu0 %v606
        %v608 = vpop.xlane.xlu0 %607
        %v609 = vsub.f32 %v544, %v563
        %v610 = vsub.f32 %v545, %v566
        %v611 = vsub.f32 %v546, %v569
        %v612 = vsub.f32 %v547, %v572
        %v613 = vsub.f32 %v548, %v575
        %v614 = vsub.f32 %v549, %v578
        %v615 = vsub.f32 %v550, %v581
        %v616 = vsub.f32 %v551, %v584
        %v617 = vsub.f32 %v552, %v587
        %v618 = vsub.f32 %v553, %v590
        %v619 = vsub.f32 %v554, %v593
        %v620 = vsub.f32 %v555, %v596
        %v621 = vsub.f32 %v556, %v599
        %v622 = vsub.f32 %v557, %v602
        %v623 = vsub.f32 %v558, %v605
        %v624 = vsub.f32 %v559, %v608
        %v625 = vmul.f32 %v609, 1.442695
        %v626 = vpow.pop %v625
        %v627 = vmul.f32 %v610, 1.442695
        %v628 = vpow.pop %v627
        %v629 = vmul.f32 %v611, 1.442695
        %v630 = vpow.pop %v629
        %v631 = vmul.f32 %v612, 1.442695
        %v632 = vpow.pop %v631
        %v633 = vmul.f32 %v613, 1.442695
        %v634 = vpow.pop %v633
        %v635 = vmul.f32 %v614, 1.442695
        %v636 = vpow.pop %v635
        %v637 = vmul.f32 %v615, 1.442695
        %v638 = vpow.pop %v637
        %v639 = vmul.f32 %v616, 1.442695
        %v640 = vpow.pop %v639
        %v641 = vmul.f32 %v617, 1.442695
        %v642 = vpow.pop %v641
        %v643 = vmul.f32 %v618, 1.442695
        %v644 = vpow.pop %v643
        %v645 = vmul.f32 %v619, 1.442695
        %v646 = vpow.pop %v645
        %v647 = vmul.f32 %v620, 1.442695
        %v648 = vpow.pop %v647
        %v649 = vmul.f32 %v621, 1.442695
        %v650 = vpow.pop %v649
        %v651 = vmul.f32 %v622, 1.442695
        %v652 = vpow.pop %v651
        %v653 = vmul.f32 %v623, 1.442695
        %v654 = vpow.pop %v653
        %v655 = vmul.f32 %v624, 1.442695
        %v656 = vpow.pop %v655
        %v657 = vsel %vm560, %v626, 0.0
        %658 = vadd.xlane.f32.xlu0 %v657
        %v659 = vpop.xlane.xlu0 %658
        %v660 = vsel %vm560, %v628, 0.0
        %661 = vadd.xlane.f32.xlu0 %v660
        %v662 = vpop.xlane.xlu0 %661
        %v663 = vsel %vm560, %v630, 0.0
        %664 = vadd.xlane.f32.xlu0 %v663
        %v665 = vpop.xlane.xlu0 %664
        %v666 = vsel %vm560, %v632, 0.0
        %667 = vadd.xlane.f32.xlu0 %v666
        %v668 = vpop.xlane.xlu0 %667
        %v669 = vsel %vm560, %v634, 0.0
        %670 = vadd.xlane.f32.xlu0 %v669
        %v671 = vpop.xlane.xlu0 %670
        %v672 = vsel %vm560, %v636, 0.0
        %673 = vadd.xlane.f32.xlu0 %v672
        %v674 = vpop.xlane.xlu0 %673
        %v675 = vsel %vm560, %v638, 0.0
        %676 = vadd.xlane.f32.xlu0 %v675
        %v677 = vpop.xlane.xlu0 %676
        %v678 = vsel %vm560, %v640, 0.0
        %679 = vadd.xlane.f32.xlu0 %v678
        %v680 = vpop.xlane.xlu0 %679
        %v681 = vsel %vm560, %v642, 0.0
        %682 = vadd.xlane.f32.xlu0 %v681
        %v683 = vpop.xlane.xlu0 %682
        %v684 = vsel %vm560, %v644, 0.0
        %685 = vadd.xlane.f32.xlu0 %v684
        %v686 = vpop.xlane.xlu0 %685
        %v687 = vsel %vm560, %v646, 0.0
        %688 = vadd.xlane.f32.xlu0 %v687
        %v689 = vpop.xlane.xlu0 %688
        %v690 = vsel %vm560, %v648, 0.0
        %691 = vadd.xlane.f32.xlu0 %v690
        %v692 = vpop.xlane.xlu0 %691
        %v693 = vsel %vm560, %v650, 0.0
        %694 = vadd.xlane.f32.xlu0 %v693
        %v695 = vpop.xlane.xlu0 %694
        %v696 = vsel %vm560, %v652, 0.0
        %697 = vadd.xlane.f32.xlu0 %v696
        %v698 = vpop.xlane.xlu0 %697
        %v699 = vsel %vm560, %v654, 0.0
        %700 = vadd.xlane.f32.xlu0 %v699
        %v701 = vpop.xlane.xlu0 %700
        %v702 = vsel %vm560, %v656, 0.0
        %703 = vadd.xlane.f32.xlu0 %v702
        %v704 = vpop.xlane.xlu0 %703
        %v705 = vrcp.pop %v659
        %v706 = vmul.f32 %v659, %v705
        %v707 = vsub.f32 1.0, %v706
        %v708 = vmul.f32 %v705, %v707
        %v709 = vadd.f32 %v705, %v708
        %vm710 = vweird.f32 %v659
        %vm711 = vweird.f32 %v705
        %vm712 = vmor %vm710, %vm711
        %v713 = vsel %vm712, %v705, %v709
        %v714 = vand.u32 2147483647, %v659
        %vm715 = vcmp.eq.f32.partialorder %v714, 8.507059e+37
        %v716 = vand.u32 %v659, 2147483648
        %v717 = vor.u32 1.1754944e-38, %v716
        %v718 = vsel %vm715, %v717, %v713
        %v719 = vrcp.pop %v662
        %v720 = vmul.f32 %v662, %v719
        %v721 = vsub.f32 1.0, %v720
        %v722 = vmul.f32 %v719, %v721
        %v723 = vadd.f32 %v719, %v722
        %vm724 = vweird.f32 %v662
        %vm725 = vweird.f32 %v719
        %vm726 = vmor %vm724, %vm725
        %v727 = vsel %vm726, %v719, %v723
        %v728 = vand.u32 2147483647, %v662
        %vm729 = vcmp.eq.f32.partialorder %v728, 8.507059e+37
        %v730 = vand.u32 %v662, 2147483648
        %v731 = vor.u32 1.1754944e-38, %v730
        %v732 = vsel %vm729, %v731, %v727
        %v733 = vrcp.pop %v665
        %v734 = vmul.f32 %v665, %v733
        %v735 = vsub.f32 1.0, %v734
        %v736 = vmul.f32 %v733, %v735
        %v737 = vadd.f32 %v733, %v736
        %vm738 = vweird.f32 %v665
        %vm739 = vweird.f32 %v733
        %vm740 = vmor %vm738, %vm739
        %v741 = vsel %vm740, %v733, %v737
        %v742 = vand.u32 2147483647, %v665
        %vm743 = vcmp.eq.f32.partialorder %v742, 8.507059e+37
        %v744 = vand.u32 %v665, 2147483648
        %v745 = vor.u32 1.1754944e-38, %v744
        %v746 = vsel %vm743, %v745, %v741
        %v747 = vrcp.pop %v668
        %v748 = vmul.f32 %v668, %v747
        %v749 = vsub.f32 1.0, %v748
        %v750 = vmul.f32 %v747, %v749
        %v751 = vadd.f32 %v747, %v750
        %vm752 = vweird.f32 %v668
        %vm753 = vweird.f32 %v747
        %vm754 = vmor %vm752, %vm753
        %v755 = vsel %vm754, %v747, %v751
        %v756 = vand.u32 2147483647, %v668
        %vm757 = vcmp.eq.f32.partialorder %v756, 8.507059e+37
        %v758 = vand.u32 %v668, 2147483648
        %v759 = vor.u32 1.1754944e-38, %v758
        %v760 = vsel %vm757, %v759, %v755
        %v761 = vrcp.pop %v671
        %v762 = vmul.f32 %v671, %v761
        %v763 = vsub.f32 1.0, %v762
        %v764 = vmul.f32 %v761, %v763
        %v765 = vadd.f32 %v761, %v764
        %vm766 = vweird.f32 %v671
        %vm767 = vweird.f32 %v761
        %vm768 = vmor %vm766, %vm767
        %v769 = vsel %vm768, %v761, %v765
        %v770 = vand.u32 2147483647, %v671
        %vm771 = vcmp.eq.f32.partialorder %v770, 8.507059e+37
        %v772 = vand.u32 %v671, 2147483648
        %v773 = vor.u32 1.1754944e-38, %v772
        %v774 = vsel %vm771, %v773, %v769
        %v775 = vrcp.pop %v674
        %v776 = vmul.f32 %v674, %v775
        %v777 = vsub.f32 1.0, %v776
        %v778 = vmul.f32 %v775, %v777
        %v779 = vadd.f32 %v775, %v778
        %vm780 = vweird.f32 %v674
        %vm781 = vweird.f32 %v775
        %vm782 = vmor %vm780, %vm781
        %v783 = vsel %vm782, %v775, %v779
        %v784 = vand.u32 2147483647, %v674
        %vm785 = vcmp.eq.f32.partialorder %v784, 8.507059e+37
        %v786 = vand.u32 %v674, 2147483648
        %v787 = vor.u32 1.1754944e-38, %v786
        %v788 = vsel %vm785, %v787, %v783
        %v789 = vrcp.pop %v677
        %v790 = vmul.f32 %v677, %v789
        %v791 = vsub.f32 1.0, %v790
        %v792 = vmul.f32 %v789, %v791
        %v793 = vadd.f32 %v789, %v792
        %vm794 = vweird.f32 %v677
        %vm795 = vweird.f32 %v789
        %vm796 = vmor %vm794, %vm795
        %v797 = vsel %vm796, %v789, %v793
        %v798 = vand.u32 2147483647, %v677
        %vm799 = vcmp.eq.f32.partialorder %v798, 8.507059e+37
        %v800 = vand.u32 %v677, 2147483648
        %v801 = vor.u32 1.1754944e-38, %v800
        %v802 = vsel %vm799, %v801, %v797
        %v803 = vrcp.pop %v680
        %v804 = vmul.f32 %v680, %v803
        %v805 = vsub.f32 1.0, %v804
        %v806 = vmul.f32 %v803, %v805
        %v807 = vadd.f32 %v803, %v806
        %vm808 = vweird.f32 %v680
        %vm809 = vweird.f32 %v803
        %vm810 = vmor %vm808, %vm809
        %v811 = vsel %vm810, %v803, %v807
        %v812 = vand.u32 2147483647, %v680
        %vm813 = vcmp.eq.f32.partialorder %v812, 8.507059e+37
        %v814 = vand.u32 %v680, 2147483648
        %v815 = vor.u32 1.1754944e-38, %v814
        %v816 = vsel %vm813, %v815, %v811
        %v817 = vrcp.pop %v683
        %v818 = vmul.f32 %v683, %v817
        %v819 = vsub.f32 1.0, %v818
        %v820 = vmul.f32 %v817, %v819
        %v821 = vadd.f32 %v817, %v820
        %vm822 = vweird.f32 %v683
        %vm823 = vweird.f32 %v817
        %vm824 = vmor %vm822, %vm823
        %v825 = vsel %vm824, %v817, %v821
        %v826 = vand.u32 2147483647, %v683
        %vm827 = vcmp.eq.f32.partialorder %v826, 8.507059e+37
        %v828 = vand.u32 %v683, 2147483648
        %v829 = vor.u32 1.1754944e-38, %v828
        %v830 = vsel %vm827, %v829, %v825
        %v831 = vrcp.pop %v686
        %v832 = vmul.f32 %v686, %v831
        %v833 = vsub.f32 1.0, %v832
        %v834 = vmul.f32 %v831, %v833
        %v835 = vadd.f32 %v831, %v834
        %vm836 = vweird.f32 %v686
        %vm837 = vweird.f32 %v831
        %vm838 = vmor %vm836, %vm837
        %v839 = vsel %vm838, %v831, %v835
        %v840 = vand.u32 2147483647, %v686
        %vm841 = vcmp.eq.f32.partialorder %v840, 8.507059e+37
        %v842 = vand.u32 %v686, 2147483648
        %v843 = vor.u32 1.1754944e-38, %v842
        %v844 = vsel %vm841, %v843, %v839
        %v845 = vrcp.pop %v689
        %v846 = vmul.f32 %v689, %v845
        %v847 = vsub.f32 1.0, %v846
        %v848 = vmul.f32 %v845, %v847
        %v849 = vadd.f32 %v845, %v848
        %vm850 = vweird.f32 %v689
        %vm851 = vweird.f32 %v845
        %vm852 = vmor %vm850, %vm851
        %v853 = vsel %vm852, %v845, %v849
        %v854 = vand.u32 2147483647, %v689
        %vm855 = vcmp.eq.f32.partialorder %v854, 8.507059e+37
        %v856 = vand.u32 %v689, 2147483648
        %v857 = vor.u32 1.1754944e-38, %v856
        %v858 = vsel %vm855, %v857, %v853
        %v859 = vrcp.pop %v692
        %v860 = vmul.f32 %v692, %v859
        %v861 = vsub.f32 1.0, %v860
        %v862 = vmul.f32 %v859, %v861
        %v863 = vadd.f32 %v859, %v862
        %vm864 = vweird.f32 %v692
        %vm865 = vweird.f32 %v859
        %vm866 = vmor %vm864, %vm865
        %v867 = vsel %vm866, %v859, %v863
        %v868 = vand.u32 2147483647, %v692
        %vm869 = vcmp.eq.f32.partialorder %v868, 8.507059e+37
        %v870 = vand.u32 %v692, 2147483648
        %v871 = vor.u32 1.1754944e-38, %v870
        %v872 = vsel %vm869, %v871, %v867
        %v873 = vrcp.pop %v695
        %v874 = vmul.f32 %v695, %v873
        %v875 = vsub.f32 1.0, %v874
        %v876 = vmul.f32 %v873, %v875
        %v877 = vadd.f32 %v873, %v876
        %vm878 = vweird.f32 %v695
        %vm879 = vweird.f32 %v873
        %vm880 = vmor %vm878, %vm879
        %v881 = vsel %vm880, %v873, %v877
        %v882 = vand.u32 2147483647, %v695
        %vm883 = vcmp.eq.f32.partialorder %v882, 8.507059e+37
        %v884 = vand.u32 %v695, 2147483648
        %v885 = vor.u32 1.1754944e-38, %v884
        %v886 = vsel %vm883, %v885, %v881
        %v887 = vrcp.pop %v698
        %v888 = vmul.f32 %v698, %v887
        %v889 = vsub.f32 1.0, %v888
        %v890 = vmul.f32 %v887, %v889
        %v891 = vadd.f32 %v887, %v890
        %vm892 = vweird.f32 %v698
        %vm893 = vweird.f32 %v887
        %vm894 = vmor %vm892, %vm893
        %v895 = vsel %vm894, %v887, %v891
        %v896 = vand.u32 2147483647, %v698
        %vm897 = vcmp.eq.f32.partialorder %v896, 8.507059e+37
        %v898 = vand.u32 %v698, 2147483648
        %v899 = vor.u32 1.1754944e-38, %v898
        %v900 = vsel %vm897, %v899, %v895
        %v901 = vrcp.pop %v701
        %v902 = vmul.f32 %v701, %v901
        %v903 = vsub.f32 1.0, %v902
        %v904 = vmul.f32 %v901, %v903
        %v905 = vadd.f32 %v901, %v904
        %vm906 = vweird.f32 %v701
        %vm907 = vweird.f32 %v901
        %vm908 = vmor %vm906, %vm907
        %v909 = vsel %vm908, %v901, %v905
        %v910 = vand.u32 2147483647, %v701
        %vm911 = vcmp.eq.f32.partialorder %v910, 8.507059e+37
        %v912 = vand.u32 %v701, 2147483648
        %v913 = vor.u32 1.1754944e-38, %v912
        %v914 = vsel %vm911, %v913, %v909
        %v915 = vrcp.pop %v704
        %v916 = vmul.f32 %v704, %v915
        %v917 = vsub.f32 1.0, %v916
        %v918 = vmul.f32 %v915, %v917
        %v919 = vadd.f32 %v915, %v918
        %vm920 = vweird.f32 %v704
        %vm921 = vweird.f32 %v915
        %vm922 = vmor %vm920, %vm921
        %v923 = vsel %vm922, %v915, %v919
        %v924 = vand.u32 2147483647, %v704
        %vm925 = vcmp.eq.f32.partialorder %v924, 8.507059e+37
        %v926 = vand.u32 %v704, 2147483648
        %v927 = vor.u32 1.1754944e-38, %v926
        %v928 = vsel %vm925, %v927, %v923
        %v929 = vmul.f32 %v626, %v718
        %v930 = vmul.f32 %v628, %v732
        %v931 = vmul.f32 %v630, %v746
        %v932 = vmul.f32 %v632, %v760
        %v933 = vmul.f32 %v634, %v774
        %v934 = vmul.f32 %v636, %v788
        %v935 = vmul.f32 %v638, %v802
        %v936 = vmul.f32 %v640, %v816
        %v937 = vmul.f32 %v642, %v830
        %v938 = vmul.f32 %v644, %v844
        %v939 = vmul.f32 %v646, %v858
        %v940 = vmul.f32 %v648, %v872
        %v941 = vmul.f32 %v650, %v886
        %v942 = vmul.f32 %v652, %v900
        %v943 = vmul.f32 %v654, %v914
        %v944 = vmul.f32 %v656, %v928
        %v945 = vpack.c.bf16 %v930, %v929
        %v946 = vpack.c.bf16 %v932, %v931
        %v947 = vpack.c.bf16 %v934, %v933
        %v948 = vpack.c.bf16 %v936, %v935
        %v949 = vpack.c.bf16 %v938, %v937
        %v950 = vpack.c.bf16 %v940, %v939
        %v951 = vpack.c.bf16 %v942, %v941
        %v952 = vpack.c.bf16 %v944, %v943
        %v954 = vsel %vm560, %v945, 0
        %v957 = vsel %vm560, %v946, 0
        %v960 = vsel %vm560, %v947, 0
        %v963 = vsel %vm560, %v948, 0
        %v966 = vsel %vm560, %v949, 0
        %v969 = vsel %vm560, %v950, 0
        %v972 = vsel %vm560, %v951, 0
        %v975 = vsel %vm560, %v952, 0
        %vm977 = vcmask 1043456
        %v979 = vsel %vm977, %v361, 0
        %981 = vmatpush.bf16.msra.mxu0 0
        %982 = vmatpush.bf16.msra.mxu0 0
        %983 = vmatpush.bf16.msra.mxu0 0
        %984 = vmatpush.bf16.msra.mxu0 0
        %985 = vmatpush.bf16.msra.mxu0 0
        %986 = vmatpush.bf16.msra.mxu0 0
        %987 = vmatpush.bf16.msra.mxu0 0
        %988 = vmatpush.bf16.msra.mxu0 %v979
        %989 = vmatmul.bf16.gmra.mxu0 %v954
        %v990 = vpop.f32.mrf.mxu0
        %v991 = vadd.f32 0.0, %v990
        %v992 = vpop.f32.mrf.mxu0
        %v993 = vadd.f32 0.0, %v992
        %994 = vmatmul.bf16.gmra.mxu0 %v957
        %v995 = vpop.f32.mrf.mxu0
        %v996 = vadd.f32 0.0, %v995
        %v997 = vpop.f32.mrf.mxu0
        %v998 = vadd.f32 0.0, %v997
        %999 = vmatmul.bf16.gmra.mxu0 %v960
        %v1000 = vpop.f32.mrf.mxu0
        %v1001 = vadd.f32 0.0, %v1000
        %v1002 = vpop.f32.mrf.mxu0
        %v1003 = vadd.f32 0.0, %v1002
        %1004 = vmatmul.bf16.gmra.mxu0 %v963
        %v1005 = vpop.f32.mrf.mxu0
        %v1006 = vadd.f32 0.0, %v1005
        %v1007 = vpop.f32.mrf.mxu0
        %v1008 = vadd.f32 0.0, %v1007
        %1009 = vmatmul.bf16.gmra.mxu0 %v966
        %v1010 = vpop.f32.mrf.mxu0
        %v1011 = vadd.f32 0.0, %v1010
        %v1012 = vpop.f32.mrf.mxu0
        %v1013 = vadd.f32 0.0, %v1012
        %1014 = vmatmul.bf16.gmra.mxu0 %v969
        %v1015 = vpop.f32.mrf.mxu0
        %v1016 = vadd.f32 0.0, %v1015
        %v1017 = vpop.f32.mrf.mxu0
        %v1018 = vadd.f32 0.0, %v1017
        %1019 = vmatmul.bf16.gmra.mxu0 %v972
        %v1020 = vpop.f32.mrf.mxu0
        %v1021 = vadd.f32 0.0, %v1020
        %v1022 = vpop.f32.mrf.mxu0
        %v1023 = vadd.f32 0.0, %v1022
        %1024 = vmatmul.bf16.gmra.mxu0 %v975
        %v1025 = vpop.f32.mrf.mxu0
        %v1026 = vadd.f32 0.0, %v1025
        %v1027 = vpop.f32.mrf.mxu0
        %v1028 = vadd.f32 0.0, %v1027
        %1029 = vdwg.mxu0
        %1030 = vst [vmem:[%s273] sm:$0xff] %v991
        %1031 = vst [vmem:[%s273 + $0x8] sm:$0xff] %v993
        %1032 = vst [vmem:[%s273 + $0x10] sm:$0xff] %v996
        %1033 = vst [vmem:[%s273 + $0x18] sm:$0xff] %v998
        %1034 = vst [vmem:[%s273 + $0x20] sm:$0xff] %v1001
        %1035 = vst [vmem:[%s273 + $0x28] sm:$0xff] %v1003
        %1036 = vst [vmem:[%s273 + $0x30] sm:$0xff] %v1006
        %1037 = vst [vmem:[%s273 + $0x38] sm:$0xff] %v1008
        %1038 = vst [vmem:[%s273 + $0x40] sm:$0xff] %v1011
        %1039 = vst [vmem:[%s273 + $0x48] sm:$0xff] %v1013
        %1040 = vst [vmem:[%s273 + $0x50] sm:$0xff] %v1016
        %1041 = vst [vmem:[%s273 + $0x58] sm:$0xff] %v1018
        %1042 = vst [vmem:[%s273 + $0x60] sm:$0xff] %v1021
        %1043 = vst [vmem:[%s273 + $0x68] sm:$0xff] %v1023
        %1044 = vst [vmem:[%s273 + $0x70] sm:$0xff] %v1026
        %1045 = vst [vmem:[%s273 + $0x78] sm:$0xff] %v1028
        %s1046 = sand.u32 %s177, 1
        %s1047 = scalar_lea.sflag [#allocation8], %s1046
        %s1048 = sand.u32 %s177, 1
        %s1049 = smul.addr %s1048, 128
        %s1050 = scalar_lea.vmem [#allocation7], %s1049
        // Predicated region
        $region49: #{tpu_custom_call.1} parent=43 // pred_check
          %p1051 = pneg %p187
        $region50: #{tpu_custom_call.1} parent=43 // pred_check_branch
          %1053 = sbr.rel (%p1051) target = $region52
        $region51: #{tpu_custom_call.1} parent=43 // pred_region
          %s1054 = smul.u32 16, %s31
          %1056 = vsyncadd %s1047, 0
          %s1057 = smul.addr %s1054, 8
          %s1058 = scalar_lea.hbm %s7, %s1057
          %s1059 = sshll.u32 %s1050, 4
          %s1060 = int_to_ptr.vmem [resolvable:$true] %s1059
          %s1061 = sshll.u32 %s1058, 4
          %s1062 = int_to_ptr.hbm [resolvable:$true] %s1061
          %1067 = dma.vmem_to_hbm [thread:$0]  %s1060, 2048, %s1062, %s1047, 128, 128, 8
        $region52: #{tpu_custom_call.1} parent=43 // pred_fallthru
          _
      $region44: #{tpu_custom_call.1} parent=5 // pred_fallthru
        _
      %p1068 = scmp.le.s32.totalorder 2, %s26
      // Predicated region
      $region53: #{tpu_custom_call.1} parent=5 // pred_check
        %p1069 = pneg %p1068
      $region54: #{tpu_custom_call.1} parent=5 // pred_check_branch
        %1071 = sbr.rel (%p1069) target = $region56
      $region55: #{tpu_custom_call.1} parent=5 // pred_region
        %s1072 = ssub.s32 %s26, 2
        // Predicated region
        $region57: #{tpu_custom_call.1} parent=55 // pred_check
          %p1073 = pneg %p193
        $region58: #{tpu_custom_call.1} parent=55 // pred_check_branch
          %1075 = sbr.rel (%p1073) target = $region60
        $region59: #{tpu_custom_call.1} parent=55 // pred_region
          %s1076 = sand.u32 %s178, 1
          %s1077 = scalar_lea.sflag [#allocation8], %s1076
          %s1078 = sand.u32 %s178, 1
          %s1079 = smul.addr %s1078, 128
          %s1080 = scalar_lea.vmem [#allocation7], %s1079
          %1082 = dma.done %s1077, 2048
        $region60: #{tpu_custom_call.1} parent=55 // pred_fallthru
          _
      $region56: #{tpu_custom_call.1} parent=5 // pred_fallthru
        _
    $region6: #{tpu_custom_call.1} parent=1 // loop_footer
      %s30 = sadd.s32 1, %s26
    $region7: #{tpu_custom_call.1} parent=1 // loop_footer_branch
      %25 = sbr.rel target = $region3
    $region8: #{tpu_custom_call.1} parent=1 // loop_exit
      _
    %1083 = vsyncpa [#allocation8], 1
    %s1084 = scalar_lea.sflag [#allocation8], 1
    %1085 = vsyncpa %s1084, 1

</llo_original>
